<compile_context>
chip_gen: v6e
topology: v6e:2x2x1
jax: 0.10.0
libtpu: 0.0.40
codegen_flags: <defaults>
</compile_context>

<pallas_src>
import jax
import jax.numpy as jnp
from jax.experimental import pallas as pl
from jax.experimental.pallas import tpu as pltpu


_TARGET_BLOCK_BYTES = 8 << 20     # ~8 MiB per (double-buffered) block
_VMEM_LIMIT_BYTES = 48 << 20      # explicit: v5e default scoped VMEM is only 16 MiB
_MAX_LANE_TILE = 65536            # cap for the lane-tiled (transposed) path
_MAX_ROW_TILE = 16384             # cap for the row-tiled (direct) path
_SUBLANE_MULT = {4: 8, 2: 16, 1: 32}   # itemsize -> sublane granularity


def _round_up(x, m):
    return ((x + m - 1) // m) * m


def _cdiv(a, b):
    return -(-a // b)


# ---------------------------------------------------------------------------
# Kernel bodies
# ---------------------------------------------------------------------------

def _one_hot_rows_kernel(y_ref, out_ref):
    """Direct layout: y_ref (TILE_N, 1) int32, out_ref (TILE_N, n_dims)."""
    tile_n, n_dims = out_ref.shape
    class_ids = jax.lax.broadcasted_iota(jnp.int32, (tile_n, n_dims), 1)
    out_ref[...] = (class_ids == y_ref[...]).astype(out_ref.dtype)


def _one_hot_transposed_kernel(y_ref, out_ref):
    """Transposed layout: y_ref (1, TILE_N) int32, out_ref (n_dims, TILE_N)."""
    n_dims, tile_n = out_ref.shape
    class_ids = jax.lax.broadcasted_iota(jnp.int32, (n_dims, tile_n), 0)
    out_ref[...] = (class_ids == y_ref[...]).astype(out_ref.dtype)


# ---------------------------------------------------------------------------
# Wrappers
# ---------------------------------------------------------------------------

def _one_hot_small_classes(y_flat, n, n_dims, dtype):
    """n_dims < 128: lane-dense (n_dims, N) slab, labels read lane-major."""
    itemsize = jnp.dtype(dtype).itemsize
    n_pad = _round_up(max(n, 1), 128)          # <=127 padded labels (negligible)
    y_row = y_flat
    if n_pad != n:
        y_row = jnp.pad(y_flat, (0, n_pad - n), constant_values=-1)
    y_row = y_row.reshape(1, n_pad)

    # VMEM bytes per output lane: sublane-padded class column + label column.
    bytes_per_lane = _round_up(n_dims, 8) * itemsize + 32
    tile_n = (_TARGET_BLOCK_BYTES // bytes_per_lane) // 128 * 128
    tile_n = max(128, min(tile_n, _MAX_LANE_TILE, n_pad))
    # Keep >=2 grid steps when possible so "parallel" shards over v7x's 2 TCs.
    if _cdiv(n_pad, tile_n) == 1 and n_pad > 128:
        tile_n = min(tile_n, _round_up(_cdiv(n_pad, 2), 128))
    grid = _cdiv(n_pad, tile_n)

    out_t = pl.pallas_call(
        _one_hot_transposed_kernel,
        out_shape=jax.ShapeDtypeStruct((n_dims, n_pad), dtype),
        grid_spec=pltpu.PrefetchScalarGridSpec(
            num_scalar_prefetch=0,
            grid=(grid,),
            in_specs=[pl.BlockSpec((1, tile_n), lambda i: (0, i))],
            out_specs=pl.BlockSpec((n_dims, tile_n), lambda i: (0, i)),
        ),
        compiler_params=pltpu.CompilerParams(
            dimension_semantics=("parallel",),
            vmem_limit_bytes=_VMEM_LIMIT_BYTES,
        ),
        cost_estimate=pl.CostEstimate(
            flops=int(n_pad) * int(n_dims),
            transcendentals=0,
            bytes_accessed=int(itemsize * n_pad * n_dims + 4 * n_pad),
        ),
    )(y_row)

    if n_pad != n:
        out_t = out_t[:, :n]
    # Single XLA relayout into the (N, n_dims) tiled final layout.
    # TODO(synk): layout-aware consumers should take `out_t` and skip this.
    return out_t.T


def _one_hot_direct(y_flat, n, n_dims, dtype):
    """n_dims >= 128: write straight into the final (N, n_dims) layout."""
    itemsize = jnp.dtype(dtype).itemsize
    sub = _SUBLANE_MULT.get(itemsize, 8)
    c_phys = _round_up(n_dims, 128)            # physical lanes of one output row
    bytes_per_row = c_phys * itemsize + 512    # output row + (rows,1) label row in VMEM
    rows = (_TARGET_BLOCK_BYTES // bytes_per_row) // sub * sub
    rows = max(sub, min(rows, _MAX_ROW_TILE))
    rows = min(rows, _round_up(max(n, 1), sub))
    # Keep >=2 grid steps when possible (v7x megacore).
    if _cdiv(n, rows) == 1 and n > sub:
        half = _round_up(_cdiv(n, 2), sub)
        if half < rows:
            rows = half
    grid = _cdiv(max(n, 1), rows)

    y_col = y_flat.reshape(n, 1)

    out = pl.pallas_call(
        _one_hot_rows_kernel,
        # Exact row count: the ragged edge block is masked by Pallas, so there
        # is no row over-padding and no post-kernel slice.
        out_shape=jax.ShapeDtypeStruct((n, n_dims), dtype),
        grid_spec=pltpu.PrefetchScalarGridSpec(
            num_scalar_prefetch=0,
            grid=(grid,),
            in_specs=[pl.BlockSpec((rows, 1), lambda i: (i, 0))],
            out_specs=pl.BlockSpec((rows, n_dims), lambda i: (i, 0)),
        ),
        compiler_params=pltpu.CompilerParams(
            dimension_semantics=("parallel",),
            vmem_limit_bytes=_VMEM_LIMIT_BYTES,
        ),
        cost_estimate=pl.CostEstimate(
            flops=int(n) * int(n_dims),
            transcendentals=0,
            bytes_accessed=int(itemsize * n * c_phys + 512 * n),
        ),
    )(y_col)
    return out


def one_hot_encode(y, n_dims=None, dtype=jnp.float32):
    """Pallas equivalent of SENN's OneHotEncode.forward.

    dtype defaults to float32 (torch parity); bf16/int8 are exact for 0/1 and
    halve/quarter the HBM write traffic if the consumer allows it.
    """
    y_flat = jnp.reshape(y, (-1,)).astype(jnp.int32)
    if n_dims is None:
        # Mirrors `int(torch.max(y_tensor)) + 1`: forces a host sync, so this
        # path only works eagerly.  Pass n_dims explicitly when under jit/vmap.
        n_dims = int(jax.device_get(jnp.max(y_flat))) + 1
    n = int(y_flat.shape[0])

    if n_dims < 128:
        flat = _one_hot_small_classes(y_flat, n, n_dims, dtype)
    else:
        flat = _one_hot_direct(y_flat, n, n_dims, dtype)

    return jnp.reshape(flat, (*y.shape, n_dims))


if __name__ == "__main__":
    key = jax.random.PRNGKey(0)

    # --- small n_dims (lane-dense transposed path), module built with n_dims=10
    n_classes = 10
    y = jax.random.randint(key, (2, 8), minval=0, maxval=n_classes, dtype=jnp.int32)
    out = jax.block_until_ready(one_hot_encode(y, n_dims=n_classes))
    ref = jax.nn.one_hot(y, n_classes, dtype=jnp.float32)
    assert out.shape == (2, 8, n_classes), out.shape
    assert out.dtype == jnp.float32
    assert bool(jnp.all(out == ref))

    # --- n_dims=None path (inferred as max(y)+1, eager-only host sync)
    out2 = jax.block_until_ready(one_hot_encode(y))
    inferred = int(jnp.max(y)) + 1
    assert out2.shape[-1] == inferred
    assert bool(jnp.all(out2 == jax.nn.one_hot(y, inferred, dtype=jnp.float32)))

    # --- large n_dims (direct path, ragged row grid: 150 rows, 2 blocks of 80)
    n_big = 200
    y_big = jax.random.randint(jax.random.PRNGKey(1), (3, 50),
                               minval=0, maxval=n_big, dtype=jnp.int32)
    out3 = jax.block_until_ready(one_hot_encode(y_big, n_dims=n_big))
    ref3 = jax.nn.one_hot(y_big, n_big, dtype=jnp.float32)
    assert out3.shape == (3, 50, n_big), out3.shape
    assert bool(jnp.all(out3 == ref3))

    # --- dtype knob: bf16 output (0/1 exact), direct path with n_dims=128
    y_bf = jax.random.randint(jax.random.PRNGKey(2), (16,),
                              minval=0, maxval=128, dtype=jnp.int32)
    out4 = jax.block_until_ready(one_hot_encode(y_bf, n_dims=128, dtype=jnp.bfloat16))
    assert out4.shape == (16, 128) and out4.dtype == jnp.bfloat16
    assert bool(jnp.all(out4.astype(jnp.float32)
                        == jax.nn.one_hot(y_bf, 128, dtype=jnp.float32)))

    print("KERNEL_OK")
</pallas_src>

<mosaic_0001>
module attributes {stable_mosaic.version = 11 : i64} {
  func.func @_one_hot_transposed_kernel(%arg0: i32, %arg1: memref<1x128xi32, #tpu.memory_space<vmem>>, %arg2: memref<10x128xf32, #tpu.memory_space<vmem>>) attributes {dimension_semantics = [#tpu.dimension_semantics<parallel>], iteration_bounds = array<i64: 1>, scalar_prefetch = 0 : i64, scratch_operands = 0 : i64, tpu.core_type = #tpu.core_type<tc>, window_params = [{transform_indices = @transform_0, window_bounds = array<i64: 1, 128>}, {transform_indices = @transform_1, window_bounds = array<i64: 10, 128>}]} {
    %0 = tpu.iota {dimensions = array<i32: 0>} : vector<10x128xi32>
    %c0 = arith.constant 0 : index
    %c0_0 = arith.constant 0 : index
    %1 = vector.load %arg1[%c0, %c0_0] : memref<1x128xi32, #tpu.memory_space<vmem>>, vector<1x128xi32>
    %2 = vector.broadcast %1 : vector<1x128xi32> to vector<10x128xi32>
    %3 = arith.cmpi eq, %0, %2 : vector<10x128xi32>
    %4 = arith.extui %3 : vector<10x128xi1> to vector<10x128xi32>
    %5 = arith.sitofp %4 : vector<10x128xi32> to vector<10x128xf32>
    %c0_1 = arith.constant 0 : index
    %c0_2 = arith.constant 0 : index
    %6 = vector.load %arg2[%c0_1, %c0_2] : memref<10x128xf32, #tpu.memory_space<vmem>>, vector<10x128xf32>
    tpu.vector_store %arg2[%c0_1, %c0_2], %5 {strides = array<i32>} : memref<10x128xf32, #tpu.memory_space<vmem>>, vector<10x128xf32>,
    return
  }
  func.func @transform_0(%arg0: i32) -> (i32, i32) {
    %c0_i32 = arith.constant 0 : i32
    %c0_i32_0 = arith.constant 0 : i32
    return %c0_i32, %arg0 : i32, i32
  }
  func.func @transform_1(%arg0: i32) -> (i32, i32) {
    %c0_i32 = arith.constant 0 : i32
    %c0_i32_0 = arith.constant 0 : i32
    return %c0_i32, %arg0 : i32, i32
  }
}

</mosaic_0001>

<llo_original>
// kernel: tpu_custom_call.1
$region0: #{tpu_custom_call.1}
  #allocation0 [shape = 'u32[]', space=smem, size = 0x4, offset = 0x4, fixed_abs, tag = 'smem constant byte address 0x4 - core index']
  #allocation1 [shape = 'u32[144,128]{1,0:T(1,128)}', space=vmem, size = 0x12000, scoped, tag = 'internal scratch']
  %s0 = inlined_call_operand.hbm [shape: s32[1,128], index: 0, kind: input, shape index: {}]
  %s1 = inlined_call_operand.hbm [shape: f32[10,128], index: 1, kind: output, shape index: {}]
  %s2 = sld [smem:[#allocation0]]
  $region18: #{tpu_custom_call.1} parent=0
    _
  %s4 = ssub.s32 1, %s2
  %s5 = scalar_select 0, %s4, %s2
  $region1: #{tpu_custom_call.1} parent=0
    #allocation2 [shape = 'u8[512]{0}', space=vmem, size = 0x400, scoped, tag = 'input window, operand 0, single buffered']
    #allocation3 [shape = 's32[1]{0}', space=sflag, size = 0x4, scoped, tag = 'scoped memory for tpu_custom_call.1']
    #allocation4 [shape = 's32[1]{0}', space=sflag, size = 0x4, scoped, tag = 'scoped memory for tpu_custom_call.1']
    #allocation5 [shape = 'u8[8192]{0}', space=vmem, size = 0x2000, scoped, tag = 'output window, operand 0, single buffered']
    %6 = vsyncpa [#allocation3], 0
    %7 = vsyncpa [#allocation4], 0
    // Predicated region
    $region2: #{tpu_custom_call.1} parent=1 // pred_check
      _
    $region3: #{tpu_custom_call.1} parent=1 // pred_check_branch
      %9 = sbr.rel (0) target = $region5
    $region4: #{tpu_custom_call.1} parent=1 // pred_region
      %s11 = ssub.s32 16, 16
      %12 = vsyncadd [#allocation3], %s11
      %s14 = sshll.u32 [#allocation2], 4
      %s15 = int_to_ptr.vmem [resolvable:$true] %s14
      %17 = dma.hbm_to_vmem [thread:$0]  %s0, 16, %s15, [#allocation3]
    $region5: #{tpu_custom_call.1} parent=1 // pred_fallthru
      _
    // Predicated region
    $region6: #{tpu_custom_call.1} parent=1 // pred_check
      _
    $region7: #{tpu_custom_call.1} parent=1 // pred_check_branch
      %19 = sbr.rel (0) target = $region9
    $region8: #{tpu_custom_call.1} parent=1 // pred_region
      %20 = dma.done [#allocation3], 16
    $region9: #{tpu_custom_call.1} parent=1 // pred_fallthru
      _
    %v21 = vlaneseq
    %v22 = vshrl.u32 %v21, 7
    %v23 = vadd.s32 %v22, 8
    %v24 = vld [vmem:[#allocation2] sm:$0x1]
    %v25 = vlaneseq
    %v26 = vshrl.u32 %v25, 7
    %v27 = vsub.s32 0, %v26
    %v28 = vrot.slane %v24, %v27
    %vm29 = vcmp.eq.s32.totalorder %v22, %v28
    %vm30 = vcmp.eq.s32.totalorder %v23, %v28
    %v31 = vsel %vm29, 1, 0
    %v32 = vsel %vm30, 1, 0
    %v33 = vcvt.s32.f32 %v31
    %v34 = vcvt.s32.f32 %v32
    %35 = vst [vmem:[#allocation5] sm:$0xff] %v33
    %36 = vst [vmem:[#allocation5 + $0x8] sm:$0x3] %v34
    // Predicated region
    $region10: #{tpu_custom_call.1} parent=1 // pred_check
      _
    $region11: #{tpu_custom_call.1} parent=1 // pred_check_branch
      %38 = sbr.rel (0) target = $region13
    $region12: #{tpu_custom_call.1} parent=1 // pred_region
      %s40 = ssub.s32 256, 256
      %41 = vsyncadd [#allocation4], %s40
      %s42 = sshll.u32 [#allocation5], 4
      %s43 = int_to_ptr.vmem [resolvable:$true] %s42
      %48 = dma.vmem_to_hbm [thread:$0]  %s43, 256, %s1, [#allocation4], 128, 128, 8
    $region13: #{tpu_custom_call.1} parent=1 // pred_fallthru
      _
    // Predicated region
    $region14: #{tpu_custom_call.1} parent=1 // pred_check
      _
    $region15: #{tpu_custom_call.1} parent=1 // pred_check_branch
      %50 = sbr.rel (0) target = $region17
    $region16: #{tpu_custom_call.1} parent=1 // pred_region
      %51 = dma.done [#allocation4], 256
    $region17: #{tpu_custom_call.1} parent=1 // pred_fallthru
      _
    %52 = vsyncpa [#allocation3], 1
    %53 = vsyncpa [#allocation4], 1

</llo_original>
